<compile_context>
chip_gen: v6e
topology: v6e:2x2x1
jax: 0.10.0
libtpu: 0.0.40
codegen_flags: <defaults>
</compile_context>

<pallas_src>
import functools

import jax
import jax.numpy as jnp
import numpy as np
from jax.experimental import pallas as pl
from jax.experimental.pallas import tpu as pltpu


def _round_up(x, m):
    return ((x + m - 1) // m) * m


# ----------------------------- fused Pallas kernel -----------------------------

def _make_fused_kernel(num_layers, KX, HP, OP):
    """Builds the fused multi-layer LSTM + Linear + Softmax kernel.

    Kernel refs:
      x_ref:    (T, 1, KX)            whole padded input sequence (VMEM resident)
      h0_ref:   (L, 1, HP)            initial hidden state (padded)
      c0_ref:   (L, 1, HP)            initial cell state (padded)
      wcat_ref: (L, KX+HP, 4*HP)      per-layer fused [Wih; Whh]^T (padded)
      b_ref:    (L, 1, 4*HP)          per-layer b_ih + b_hh (padded)
      wlin_ref: (HP, OP)              linear weight^T (padded)
      blin_ref: (1, OP)               linear bias (padded lanes = -1e30)
      probs_ref:(1, OP)               softmax(linear(h_last))
      hn_ref:   (L, 1, HP)            final hidden state
      cn_ref:   (L, 1, HP)            final cell state
    """
    L = num_layers

    def kernel(x_ref, h0_ref, c0_ref, wcat_ref, b_ref, wlin_ref, blin_ref,
               probs_ref, hn_ref, cn_ref):
        T = x_ref.shape[0]

        # Initial state -> vregs (carried through the time loop, no scratch).
        hs0 = tuple(h0_ref[layer] for layer in range(L))     # each (1, HP)
        cs0 = tuple(c0_ref[layer] for layer in range(L))     # each (1, HP)

        def cell_step(t, carry):
            hs, cs = carry
            layer_in = x_ref[t]                              # (1, KX) dynamic row
            new_hs, new_cs = [], []
            for layer in range(L):
                h = hs[layer]                                # (1, HP)
                c = cs[layer]                                # (1, HP)
                row = jnp.concatenate([layer_in, h], axis=-1)  # (1, KX+HP)
                gates = (jnp.dot(row, wcat_ref[layer],
                                 preferred_element_type=jnp.float32)
                         + b_ref[layer])                     # (1, 4*HP)

                # 128-lane aligned gate slices (HP is a multiple of 128).
                i_g = jax.nn.sigmoid(gates[:, 0 * HP:1 * HP])
                f_g = jax.nn.sigmoid(gates[:, 1 * HP:2 * HP])
                g_g = jnp.tanh(gates[:, 2 * HP:3 * HP])
                o_g = jax.nn.sigmoid(gates[:, 3 * HP:4 * HP])

                c_new = f_g * c + i_g * g_g
                h_new = o_g * jnp.tanh(c_new)
                new_hs.append(h_new)
                new_cs.append(c_new)

                if KX > HP:
                    layer_in = jnp.concatenate(
                        [h_new, jnp.zeros((1, KX - HP), jnp.float32)], axis=-1)
                else:
                    layer_in = h_new
            return tuple(new_hs), tuple(new_cs)

        # Names are short: fully unroll small trip counts for LLO visibility.
        hs, cs = jax.lax.fori_loop(0, T, cell_step, (hs0, cs0),
                                   unroll=True if T <= 32 else 4)

        # Final Linear + Softmax on the last layer's hidden state.
        h_last = hs[L - 1]                                   # (1, HP)
        logits = (jnp.dot(h_last, wlin_ref[...],
                          preferred_element_type=jnp.float32)
                  + blin_ref[...])                           # (1, OP)
        m = jnp.max(logits, axis=-1, keepdims=True)
        e = jnp.exp(logits - m)
        probs_ref[...] = e * pl.reciprocal(jnp.sum(e, axis=-1, keepdims=True),
                                           approx=True)

        for layer in range(L):
            hn_ref[layer] = hs[layer]
            cn_ref[layer] = cs[layer]

    return kernel


# ----------------------------- jitted forward over a sequence -----------------------------

@functools.partial(jax.jit, static_argnames=("hidden_size", "output_size"))
def _lstm_forward_seq(x_seq, h0, c0, w_cat, b_cat, w_lin, b_lin,
                      *, hidden_size, output_size):
    """Runs the fused kernel over a whole sequence.

    x_seq: (T, 1, input_size); h0, c0: (L, 1, hidden_size).
    Returns (probs(1,1,output), hn(L,1,H), cn(L,1,H)) of the LAST time step.
    """
    T, _, in_dim = x_seq.shape
    L = h0.shape[0]
    HP = w_lin.shape[0]
    OP = w_lin.shape[1]
    KX = w_cat.shape[1] - HP

    x_pad = jnp.zeros((T, 1, KX), jnp.float32)
    x_pad = x_pad.at[:, :, :in_dim].set(x_seq.astype(jnp.float32))
    h_pad = jnp.zeros((L, 1, HP), jnp.float32).at[:, :, :hidden_size].set(h0)
    c_pad = jnp.zeros((L, 1, HP), jnp.float32).at[:, :, :hidden_size].set(c0)

    kernel = _make_fused_kernel(L, KX, HP, OP)

    probs_p, hn_p, cn_p = pl.pallas_call(
        kernel,
        out_shape=(jax.ShapeDtypeStruct((1, OP), jnp.float32),
                   jax.ShapeDtypeStruct((L, 1, HP), jnp.float32),
                   jax.ShapeDtypeStruct((L, 1, HP), jnp.float32)),
        grid_spec=pltpu.PrefetchScalarGridSpec(
            num_scalar_prefetch=0,
            grid=(1,),
            in_specs=[
                pl.BlockSpec((T, 1, KX), lambda i: (0, 0, 0)),            # whole x seq
                pl.BlockSpec((L, 1, HP), lambda i: (0, 0, 0)),            # h0
                pl.BlockSpec((L, 1, HP), lambda i: (0, 0, 0)),            # c0
                pl.BlockSpec((L, KX + HP, 4 * HP), lambda i: (0, 0, 0)),  # fused weights
                pl.BlockSpec((L, 1, 4 * HP), lambda i: (0, 0, 0)),        # fused biases
                pl.BlockSpec((HP, OP), lambda i: (0, 0)),                 # linear W^T
                pl.BlockSpec((1, OP), lambda i: (0, 0)),                  # linear bias
            ],
            out_specs=[
                pl.BlockSpec((1, OP), lambda i: (0, 0)),                  # probs
                pl.BlockSpec((L, 1, HP), lambda i: (0, 0, 0)),            # hn
                pl.BlockSpec((L, 1, HP), lambda i: (0, 0, 0)),            # cn
            ],
        ),
        compiler_params=pltpu.CompilerParams(
            dimension_semantics=("arbitrary",)),
    )(x_pad, h_pad, c_pad, w_cat, b_cat, w_lin, b_lin)

    probs = probs_p[:, :output_size]                                      # (1, out)
    hn = hn_p[:, :, :hidden_size]
    cn = cn_p[:, :, :hidden_size]
    return probs[None, :, :], hn, cn


# ----------------------------- Model -----------------------------

class LSTMPallas:
    """Mirrors the PyTorch `LSTM` module's forward(input, hidden, c)."""

    def __init__(self, input_size, hidden_size, output_size, num_layers=1, seed=0):
        self.input_size = input_size
        self.hidden_size = hidden_size
        self.output_size = output_size
        self.num_layers = num_layers

        HP = _round_up(hidden_size, 128)
        OP = _round_up(output_size, 128)
        IP = _round_up(input_size, 128)
        KX = max(IP, HP)
        self._HP, self._OP, self._KX = HP, OP, KX

        key = jax.random.PRNGKey(seed)
        bound = 1.0 / float(np.sqrt(hidden_size))
        H = hidden_size

        # raw (un-padded) weights kept for the pure-JAX reference check
        self.w_ih_raw, self.w_hh_raw = [], []
        self.b_ih_raw, self.b_hh_raw = [], []

        w_cat = jnp.zeros((num_layers, KX + HP, 4 * HP), jnp.float32)
        b_cat = jnp.zeros((num_layers, 1, 4 * HP), jnp.float32)
        for layer in range(num_layers):
            in_feat = input_size if layer == 0 else hidden_size
            key, k1, k2, k3, k4 = jax.random.split(key, 5)
            w_ih = jax.random.uniform(k1, (4 * H, in_feat), jnp.float32, -bound, bound)
            w_hh = jax.random.uniform(k2, (4 * H, H), jnp.float32, -bound, bound)
            b_ih = jax.random.uniform(k3, (4 * H,), jnp.float32, -bound, bound)
            b_hh = jax.random.uniform(k4, (4 * H,), jnp.float32, -bound, bound)
            self.w_ih_raw.append(w_ih)
            self.w_hh_raw.append(w_hh)
            self.b_ih_raw.append(b_ih)
            self.b_hh_raw.append(b_hh)
            b_sum = b_ih + b_hh
            for g in range(4):
                w_cat = w_cat.at[layer, 0:in_feat, g * HP:g * HP + H].set(
                    w_ih[g * H:(g + 1) * H, :].T)
                w_cat = w_cat.at[layer, KX:KX + H, g * HP:g * HP + H].set(
                    w_hh[g * H:(g + 1) * H, :].T)
                b_cat = b_cat.at[layer, 0, g * HP:g * HP + H].set(
                    b_sum[g * H:(g + 1) * H])
        self.w_cat = w_cat
        self.b_cat = b_cat

        key, k5, k6 = jax.random.split(key, 3)
        w_lin = jax.random.uniform(k5, (output_size, H), jnp.float32, -bound, bound)
        b_lin = jax.random.uniform(k6, (output_size,), jnp.float32, -bound, bound)
        self.w_lin_raw = w_lin
        self.b_lin_raw = b_lin
        # padded linear weights; padded bias lanes get -1e30 so softmax ignores them
        self.w_lin_pad = jnp.zeros((HP, OP), jnp.float32).at[:H, :output_size].set(w_lin.T)
        self.b_lin_pad = jnp.full((1, OP), -1e30, jnp.float32).at[0, :output_size].set(b_lin)

    def init_hidden_and_c(self):
        z = jnp.zeros((self.num_layers, 1, self.hidden_size), jnp.float32)
        return z, z

    def forward(self, x, hidden, c):
        """x: (1, input_size); hidden, c: (num_layers, 1, hidden_size).

        Returns (softmax(linear(rr)) with shape (1,1,output), hn, cn).
        """
        return _lstm_forward_seq(x[None, :, :], hidden, c,
                                 self.w_cat, self.b_cat,
                                 self.w_lin_pad, self.b_lin_pad,
                                 hidden_size=self.hidden_size,
                                 output_size=self.output_size)

    __call__ = forward

    def predict_one_name(self, name_tensor):
        """name_tensor: (seq_len, 1, input_size) one-hot sequence.

        Single jit dispatch / single fused kernel launch over the whole name.
        """
        hidden, c = self.init_hidden_and_c()
        probs, _, _ = _lstm_forward_seq(name_tensor, hidden, c,
                                        self.w_cat, self.b_cat,
                                        self.w_lin_pad, self.b_lin_pad,
                                        hidden_size=self.hidden_size,
                                        output_size=self.output_size)
        return probs[0]   # == output.squeeze(0), shape (1, output_size)


# ----------------------------- pure-JAX reference -----------------------------

def _reference_seq(model, name_tensor):
    """Straightforward LSTM + Linear + Softmax over the sequence (no Pallas)."""
    L, H = model.num_layers, model.hidden_size
    hi = jax.lax.Precision.HIGHEST
    h = jnp.zeros((L, 1, H), jnp.float32)
    c = jnp.zeros((L, 1, H), jnp.float32)
    inp = name_tensor[0]
    for t in range(name_tensor.shape[0]):
        inp = name_tensor[t]
        new_h, new_c = [], []
        for layer in range(L):
            gates = (jnp.dot(inp, model.w_ih_raw[layer].T, precision=hi)
                     + jnp.dot(h[layer], model.w_hh_raw[layer].T, precision=hi)
                     + model.b_ih_raw[layer] + model.b_hh_raw[layer])
            i_g = jax.nn.sigmoid(gates[:, 0 * H:1 * H])
            f_g = jax.nn.sigmoid(gates[:, 1 * H:2 * H])
            g_g = jnp.tanh(gates[:, 2 * H:3 * H])
            o_g = jax.nn.sigmoid(gates[:, 3 * H:4 * H])
            c_new = f_g * c[layer] + i_g * g_g
            h_new = o_g * jnp.tanh(c_new)
            new_h.append(h_new)
            new_c.append(c_new)
            inp = h_new
        h = jnp.stack(new_h, axis=0)
        c = jnp.stack(new_c, axis=0)
    logits = jnp.dot(inp, model.w_lin_raw.T, precision=hi) + model.b_lin_raw
    probs = jax.nn.softmax(logits, axis=-1)
    return probs[None, :, :], h, c


# ----------------------------- demo / smoke test -----------------------------

if __name__ == "__main__":
    input_size = 16     # "n_letters"
    hidden_size = 32
    output_size = 8     # number of language categories
    num_layers = 2
    seq_len = 6

    model = LSTMPallas(input_size, hidden_size, output_size,
                       num_layers=num_layers, seed=0)

    # Deterministic one-hot "name" tensor: (seq_len, 1, input_size)
    key = jax.random.PRNGKey(0)
    letter_ids = jax.random.randint(key, (seq_len,), 0, input_size)
    name_tensor = jax.nn.one_hot(letter_ids, input_size, dtype=jnp.float32)[:, None, :]

    # --- single-step forward (matches module.forward signature) ---
    hidden, c = model.init_hidden_and_c()
    probs, hn, cn = model(name_tensor[0], hidden, c)
    probs = jax.block_until_ready(probs)
    hn = jax.block_until_ready(hn)
    cn = jax.block_until_ready(cn)

    assert probs.shape == (1, 1, output_size)
    assert hn.shape == (num_layers, 1, hidden_size)
    assert cn.shape == (num_layers, 1, hidden_size)
    assert abs(float(jnp.sum(probs)) - 1.0) < 1e-2   # softmax sums to ~1

    # --- full-name prediction: one fused kernel launch for the whole name ---
    final = jax.block_until_ready(model.predict_one_name(name_tensor))
    assert final.shape == (1, output_size)

    # --- correctness vs pure-JAX reference ---
    ref1_probs, ref1_hn, ref1_cn = _reference_seq(model, name_tensor[:1])
    np.testing.assert_allclose(np.asarray(probs), np.asarray(ref1_probs),
                               atol=5e-3, rtol=5e-3)
    np.testing.assert_allclose(np.asarray(hn), np.asarray(ref1_hn),
                               atol=5e-3, rtol=5e-3)
    np.testing.assert_allclose(np.asarray(cn), np.asarray(ref1_cn),
                               atol=5e-3, rtol=5e-3)

    ref_probs, _, _ = _reference_seq(model, name_tensor)
    np.testing.assert_allclose(np.asarray(final), np.asarray(ref_probs[0]),
                               atol=5e-3, rtol=5e-3)

    print("KERNEL_OK")
</pallas_src>

<mosaic_0001>
module attributes {stable_mosaic.version = 11 : i64} {
  func.func @kernel(%arg0: i32, %arg1: memref<1x1x128xf32, #tpu.memory_space<vmem>>, %arg2: memref<2x1x128xf32, #tpu.memory_space<vmem>>, %arg3: memref<2x1x128xf32, #tpu.memory_space<vmem>>, %arg4: memref<2x256x512xf32, #tpu.memory_space<vmem>>, %arg5: memref<2x1x512xf32, #tpu.memory_space<vmem>>, %arg6: memref<128x128xf32, #tpu.memory_space<vmem>>, %arg7: memref<1x128xf32, #tpu.memory_space<vmem>>, %arg8: memref<1x128xf32, #tpu.memory_space<vmem>>, %arg9: memref<2x1x128xf32, #tpu.memory_space<vmem>>, %arg10: memref<2x1x128xf32, #tpu.memory_space<vmem>>) attributes {dimension_semantics = [#tpu.dimension_semantics<arbitrary>], iteration_bounds = array<i64: 1>, scalar_prefetch = 0 : i64, scratch_operands = 0 : i64, tpu.core_type = #tpu.core_type<tc>, window_params = [{pipeline_mode = #tpu.pipeline_mode<synchronous>, transform_indices = @transform_0, window_bounds = array<i64: 1, 1, 128>}, {pipeline_mode = #tpu.pipeline_mode<synchronous>, transform_indices = @transform_1, window_bounds = array<i64: 2, 1, 128>}, {pipeline_mode = #tpu.pipeline_mode<synchronous>, transform_indices = @transform_2, window_bounds = array<i64: 2, 1, 128>}, {pipeline_mode = #tpu.pipeline_mode<synchronous>, transform_indices = @transform_3, window_bounds = array<i64: 2, 256, 512>}, {pipeline_mode = #tpu.pipeline_mode<synchronous>, transform_indices = @transform_4, window_bounds = array<i64: 2, 1, 512>}, {pipeline_mode = #tpu.pipeline_mode<synchronous>, transform_indices = @transform_5, window_bounds = array<i64: 128, 128>}, {pipeline_mode = #tpu.pipeline_mode<synchronous>, transform_indices = @transform_6, window_bounds = array<i64: 1, 128>}, {pipeline_mode = #tpu.pipeline_mode<synchronous>, transform_indices = @transform_7, window_bounds = array<i64: 1, 128>}, {pipeline_mode = #tpu.pipeline_mode<synchronous>, transform_indices = @transform_8, window_bounds = array<i64: 2, 1, 128>}, {pipeline_mode = #tpu.pipeline_mode<synchronous>, transform_indices = @transform_9, window_bounds = array<i64: 2, 1, 128>}]} {
    %c0 = arith.constant 0 : index
    %c0_0 = arith.constant 0 : index
    %c0_1 = arith.constant 0 : index
    %0 = vector.load %arg2[%c0, %c0_0, %c0_1] : memref<2x1x128xf32, #tpu.memory_space<vmem>>, vector<1x1x128xf32>
    %1 = vector.shape_cast %0 : vector<1x1x128xf32> to vector<1x128xf32>
    %c1 = arith.constant 1 : index
    %c0_2 = arith.constant 0 : index
    %c0_3 = arith.constant 0 : index
    %2 = vector.load %arg2[%c1, %c0_2, %c0_3] : memref<2x1x128xf32, #tpu.memory_space<vmem>>, vector<1x1x128xf32>
    %3 = vector.shape_cast %2 : vector<1x1x128xf32> to vector<1x128xf32>
    %c0_4 = arith.constant 0 : index
    %c0_5 = arith.constant 0 : index
    %c0_6 = arith.constant 0 : index
    %4 = vector.load %arg3[%c0_4, %c0_5, %c0_6] : memref<2x1x128xf32, #tpu.memory_space<vmem>>, vector<1x1x128xf32>
    %5 = vector.shape_cast %4 : vector<1x1x128xf32> to vector<1x128xf32>
    %c1_7 = arith.constant 1 : index
    %c0_8 = arith.constant 0 : index
    %c0_9 = arith.constant 0 : index
    %6 = vector.load %arg3[%c1_7, %c0_8, %c0_9] : memref<2x1x128xf32, #tpu.memory_space<vmem>>, vector<1x1x128xf32>
    %7 = vector.shape_cast %6 : vector<1x1x128xf32> to vector<1x128xf32>
    %c0_i32 = arith.constant 0 : i32
    %8 = arith.index_cast %c0_i32 : i32 to index
    %c0_10 = arith.constant 0 : index
    %c0_11 = arith.constant 0 : index
    %9 = vector.load %arg1[%8, %c0_10, %c0_11] : memref<1x1x128xf32, #tpu.memory_space<vmem>>, vector<1x1x128xf32>
    %10 = vector.shape_cast %9 : vector<1x1x128xf32> to vector<1x128xf32>
    %11 = tpu.concatenate %10, %1 in 1 : vector<1x128xf32>, vector<1x128xf32> -> vector<1x256xf32>
    %c0_12 = arith.constant 0 : index
    %c0_13 = arith.constant 0 : index
    %c0_14 = arith.constant 0 : index
    %12 = vector.load %arg4[%c0_12, %c0_13, %c0_14] : memref<2x256x512xf32, #tpu.memory_space<vmem>>, vector<1x256x512xf32>
    %13 = vector.shape_cast %12 : vector<1x256x512xf32> to vector<256x512xf32>
    %cst = arith.constant dense<0.000000e+00> : vector<1x512xf32>
    %14 = tpu.matmul %11, %13, %cst {dimension_numbers = #tpu.dot_dimension_numbers<[1], [0], [0], [1], [0, 0, 1, 1], [], []>} : vector<1x256xf32>, vector<256x512xf32>, vector<1x512xf32> -> vector<1x512xf32>
    %c0_15 = arith.constant 0 : index
    %c0_16 = arith.constant 0 : index
    %c0_17 = arith.constant 0 : index
    %15 = vector.load %arg5[%c0_15, %c0_16, %c0_17] : memref<2x1x512xf32, #tpu.memory_space<vmem>>, vector<1x1x512xf32>
    %16 = vector.shape_cast %15 : vector<1x1x512xf32> to vector<1x512xf32>
    %17 = arith.addf %14, %16 : vector<1x512xf32>
    %18 = vector.extract_strided_slice %17 {offsets = [0, 0], sizes = [1, 128], strides = [1, 1]} : vector<1x512xf32> to vector<1x128xf32>
    %19 = arith.negf %18 : vector<1x128xf32>
    %20 = math.exp %19 : vector<1x128xf32>
    %cst_18 = arith.constant 1.000000e+00 : f32
    %21 = vector.broadcast %cst_18 : f32 to vector<1x128xf32>
    %22 = arith.addf %21, %20 : vector<1x128xf32>
    %23 = arith.divf %21, %22 : vector<1x128xf32>
    %24 = vector.extract_strided_slice %17 {offsets = [0, 128], sizes = [1, 128], strides = [1, 1]} : vector<1x512xf32> to vector<1x128xf32>
    %25 = arith.negf %24 : vector<1x128xf32>
    %26 = math.exp %25 : vector<1x128xf32>
    %cst_19 = arith.constant 1.000000e+00 : f32
    %27 = vector.broadcast %cst_19 : f32 to vector<1x128xf32>
    %28 = arith.addf %27, %26 : vector<1x128xf32>
    %29 = arith.divf %27, %28 : vector<1x128xf32>
    %30 = vector.extract_strided_slice %17 {offsets = [0, 256], sizes = [1, 128], strides = [1, 1]} : vector<1x512xf32> to vector<1x128xf32>
    %31 = math.tanh %30 : vector<1x128xf32>
    %32 = vector.extract_strided_slice %17 {offsets = [0, 384], sizes = [1, 128], strides = [1, 1]} : vector<1x512xf32> to vector<1x128xf32>
    %33 = arith.negf %32 : vector<1x128xf32>
    %34 = math.exp %33 : vector<1x128xf32>
    %cst_20 = arith.constant 1.000000e+00 : f32
    %35 = vector.broadcast %cst_20 : f32 to vector<1x128xf32>
    %36 = arith.addf %35, %34 : vector<1x128xf32>
    %37 = arith.divf %35, %36 : vector<1x128xf32>
    %38 = arith.mulf %29, %5 : vector<1x128xf32>
    %39 = arith.mulf %23, %31 : vector<1x128xf32>
    %40 = arith.addf %38, %39 : vector<1x128xf32>
    %41 = math.tanh %40 : vector<1x128xf32>
    %42 = arith.mulf %37, %41 : vector<1x128xf32>
    %43 = tpu.concatenate %42, %3 in 1 : vector<1x128xf32>, vector<1x128xf32> -> vector<1x256xf32>
    %c1_21 = arith.constant 1 : index
    %c0_22 = arith.constant 0 : index
    %c0_23 = arith.constant 0 : index
    %44 = vector.load %arg4[%c1_21, %c0_22, %c0_23] : memref<2x256x512xf32, #tpu.memory_space<vmem>>, vector<1x256x512xf32>
    %45 = vector.shape_cast %44 : vector<1x256x512xf32> to vector<256x512xf32>
    %cst_24 = arith.constant dense<0.000000e+00> : vector<1x512xf32>
    %46 = tpu.matmul %43, %45, %cst_24 {dimension_numbers = #tpu.dot_dimension_numbers<[1], [0], [0], [1], [0, 0, 1, 1], [], []>} : vector<1x256xf32>, vector<256x512xf32>, vector<1x512xf32> -> vector<1x512xf32>
    %c1_25 = arith.constant 1 : index
    %c0_26 = arith.constant 0 : index
    %c0_27 = arith.constant 0 : index
    %47 = vector.load %arg5[%c1_25, %c0_26, %c0_27] : memref<2x1x512xf32, #tpu.memory_space<vmem>>, vector<1x1x512xf32>
    %48 = vector.shape_cast %47 : vector<1x1x512xf32> to vector<1x512xf32>
    %49 = arith.addf %46, %48 : vector<1x512xf32>
    %50 = vector.extract_strided_slice %49 {offsets = [0, 0], sizes = [1, 128], strides = [1, 1]} : vector<1x512xf32> to vector<1x128xf32>
    %51 = arith.negf %50 : vector<1x128xf32>
    %52 = math.exp %51 : vector<1x128xf32>
    %cst_28 = arith.constant 1.000000e+00 : f32
    %53 = vector.broadcast %cst_28 : f32 to vector<1x128xf32>
    %54 = arith.addf %53, %52 : vector<1x128xf32>
    %55 = arith.divf %53, %54 : vector<1x128xf32>
    %56 = vector.extract_strided_slice %49 {offsets = [0, 128], sizes = [1, 128], strides = [1, 1]} : vector<1x512xf32> to vector<1x128xf32>
    %57 = arith.negf %56 : vector<1x128xf32>
    %58 = math.exp %57 : vector<1x128xf32>
    %cst_29 = arith.constant 1.000000e+00 : f32
    %59 = vector.broadcast %cst_29 : f32 to vector<1x128xf32>
    %60 = arith.addf %59, %58 : vector<1x128xf32>
    %61 = arith.divf %59, %60 : vector<1x128xf32>
    %62 = vector.extract_strided_slice %49 {offsets = [0, 256], sizes = [1, 128], strides = [1, 1]} : vector<1x512xf32> to vector<1x128xf32>
    %63 = math.tanh %62 : vector<1x128xf32>
    %64 = vector.extract_strided_slice %49 {offsets = [0, 384], sizes = [1, 128], strides = [1, 1]} : vector<1x512xf32> to vector<1x128xf32>
    %65 = arith.negf %64 : vector<1x128xf32>
    %66 = math.exp %65 : vector<1x128xf32>
    %cst_30 = arith.constant 1.000000e+00 : f32
    %67 = vector.broadcast %cst_30 : f32 to vector<1x128xf32>
    %68 = arith.addf %67, %66 : vector<1x128xf32>
    %69 = arith.divf %67, %68 : vector<1x128xf32>
    %70 = arith.mulf %61, %7 : vector<1x128xf32>
    %71 = arith.mulf %55, %63 : vector<1x128xf32>
    %72 = arith.addf %70, %71 : vector<1x128xf32>
    %73 = math.tanh %72 : vector<1x128xf32>
    %74 = arith.mulf %69, %73 : vector<1x128xf32>
    %c1_i32 = arith.constant 1 : i32
    %c0_31 = arith.constant 0 : index
    %c0_32 = arith.constant 0 : index
    %75 = vector.load %arg6[%c0_31, %c0_32] : memref<128x128xf32, #tpu.memory_space<vmem>>, vector<128x128xf32>
    %cst_33 = arith.constant dense<0.000000e+00> : vector<1x128xf32>
    %76 = tpu.matmul %74, %75, %cst_33 {dimension_numbers = #tpu.dot_dimension_numbers<[1], [0], [0], [1], [0, 0, 1, 1], [], []>} : vector<1x128xf32>, vector<128x128xf32>, vector<1x128xf32> -> vector<1x128xf32>
    %c0_34 = arith.constant 0 : index
    %c0_35 = arith.constant 0 : index
    %77 = vector.load %arg7[%c0_34, %c0_35] : memref<1x128xf32, #tpu.memory_space<vmem>>, vector<1x128xf32>
    %78 = arith.addf %76, %77 : vector<1x128xf32>
    %cst_36 = arith.constant dense<0xFF800000> : vector<1xf32>
    %79 = vector.multi_reduction <maximumf>, %78, %cst_36 [1] : vector<1x128xf32> to vector<1xf32>
    %80 = vector.shape_cast %79 : vector<1xf32> to vector<1x1xf32>
    %81 = vector.broadcast %80 : vector<1x1xf32> to vector<1x128xf32>
    %82 = arith.subf %78, %81 : vector<1x128xf32>
    %83 = math.exp %82 : vector<1x128xf32>
    %cst_37 = arith.constant dense<0.000000e+00> : vector<1xf32>
    %84 = vector.multi_reduction <add>, %83, %cst_37 [1] : vector<1x128xf32> to vector<1xf32>
    %85 = vector.shape_cast %84 : vector<1xf32> to vector<1x1xf32>
    %86 = tpu.reciprocal %85 {approx = true} : vector<1x1xf32> -> vector<1x1xf32>
    %87 = vector.broadcast %86 : vector<1x1xf32> to vector<1x128xf32>
    %88 = arith.mulf %83, %87 : vector<1x128xf32>
    %c0_38 = arith.constant 0 : index
    %c0_39 = arith.constant 0 : index
    %89 = vector.load %arg8[%c0_38, %c0_39] : memref<1x128xf32, #tpu.memory_space<vmem>>, vector<1x128xf32>
    tpu.vector_store %arg8[%c0_38, %c0_39], %88 {strides = array<i32>} : memref<1x128xf32, #tpu.memory_space<vmem>>, vector<1x128xf32>,
    %c0_40 = arith.constant 0 : index
    %c0_41 = arith.constant 0 : index
    %c0_42 = arith.constant 0 : index
    %90 = vector.load %arg9[%c0_40, %c0_41, %c0_42] : memref<2x1x128xf32, #tpu.memory_space<vmem>>, vector<1x1x128xf32>
    %91 = vector.shape_cast %90 : vector<1x1x128xf32> to vector<1x128xf32>
    %92 = vector.shape_cast %42 : vector<1x128xf32> to vector<1x1x128xf32>
    tpu.vector_store %arg9[%c0_40, %c0_41, %c0_42], %92 {strides = array<i32>} : memref<2x1x128xf32, #tpu.memory_space<vmem>>, vector<1x1x128xf32>,
    %c0_43 = arith.constant 0 : index
    %c0_44 = arith.constant 0 : index
    %c0_45 = arith.constant 0 : index
    %93 = vector.load %arg10[%c0_43, %c0_44, %c0_45] : memref<2x1x128xf32, #tpu.memory_space<vmem>>, vector<1x1x128xf32>
    %94 = vector.shape_cast %93 : vector<1x1x128xf32> to vector<1x128xf32>
    %95 = vector.shape_cast %40 : vector<1x128xf32> to vector<1x1x128xf32>
    tpu.vector_store %arg10[%c0_43, %c0_44, %c0_45], %95 {strides = array<i32>} : memref<2x1x128xf32, #tpu.memory_space<vmem>>, vector<1x1x128xf32>,
    %c1_46 = arith.constant 1 : index
    %c0_47 = arith.constant 0 : index
    %c0_48 = arith.constant 0 : index
    %96 = vector.load %arg9[%c1_46, %c0_47, %c0_48] : memref<2x1x128xf32, #tpu.memory_space<vmem>>, vector<1x1x128xf32>
    %97 = vector.shape_cast %96 : vector<1x1x128xf32> to vector<1x128xf32>
    %98 = vector.shape_cast %74 : vector<1x128xf32> to vector<1x1x128xf32>
    tpu.vector_store %arg9[%c1_46, %c0_47, %c0_48], %98 {strides = array<i32>} : memref<2x1x128xf32, #tpu.memory_space<vmem>>, vector<1x1x128xf32>,
    %c1_49 = arith.constant 1 : index
    %c0_50 = arith.constant 0 : index
    %c0_51 = arith.constant 0 : index
    %99 = vector.load %arg10[%c1_49, %c0_50, %c0_51] : memref<2x1x128xf32, #tpu.memory_space<vmem>>, vector<1x1x128xf32>
    %100 = vector.shape_cast %99 : vector<1x1x128xf32> to vector<1x128xf32>
    %101 = vector.shape_cast %72 : vector<1x128xf32> to vector<1x1x128xf32>
    tpu.vector_store %arg10[%c1_49, %c0_50, %c0_51], %101 {strides = array<i32>} : memref<2x1x128xf32, #tpu.memory_space<vmem>>, vector<1x1x128xf32>,
    return
  }
  func.func @transform_0(%arg0: i32) -> (i32, i32, i32) {
    %c0_i32 = arith.constant 0 : i32
    %c0_i32_0 = arith.constant 0 : i32
    %c0_i32_1 = arith.constant 0 : i32
    %c0_i32_2 = arith.constant 0 : i32
    return %c0_i32, %c0_i32_0, %c0_i32_1 : i32, i32, i32
  }
  func.func @transform_1(%arg0: i32) -> (i32, i32, i32) {
    %c0_i32 = arith.constant 0 : i32
    %c0_i32_0 = arith.constant 0 : i32
    %c0_i32_1 = arith.constant 0 : i32
    %c0_i32_2 = arith.constant 0 : i32
    return %c0_i32, %c0_i32_0, %c0_i32_1 : i32, i32, i32
  }
  func.func @transform_2(%arg0: i32) -> (i32, i32, i32) {
    %c0_i32 = arith.constant 0 : i32
    %c0_i32_0 = arith.constant 0 : i32
    %c0_i32_1 = arith.constant 0 : i32
    %c0_i32_2 = arith.constant 0 : i32
    return %c0_i32, %c0_i32_0, %c0_i32_1 : i32, i32, i32
  }
  func.func @transform_3(%arg0: i32) -> (i32, i32, i32) {
    %c0_i32 = arith.constant 0 : i32
    %c0_i32_0 = arith.constant 0 : i32
    %c0_i32_1 = arith.constant 0 : i32
    %c0_i32_2 = arith.constant 0 : i32
    return %c0_i32, %c0_i32_0, %c0_i32_1 : i32, i32, i32
  }
  func.func @transform_4(%arg0: i32) -> (i32, i32, i32) {
    %c0_i32 = arith.constant 0 : i32
    %c0_i32_0 = arith.constant 0 : i32
    %c0_i32_1 = arith.constant 0 : i32
    %c0_i32_2 = arith.constant 0 : i32
    return %c0_i32, %c0_i32_0, %c0_i32_1 : i32, i32, i32
  }
  func.func @transform_5(%arg0: i32) -> (i32, i32) {
    %c0_i32 = arith.constant 0 : i32
    %c0_i32_0 = arith.constant 0 : i32
    %c0_i32_1 = arith.constant 0 : i32
    return %c0_i32, %c0_i32_0 : i32, i32
  }
  func.func @transform_6(%arg0: i32) -> (i32, i32) {
    %c0_i32 = arith.constant 0 : i32
    %c0_i32_0 = arith.constant 0 : i32
    %c0_i32_1 = arith.constant 0 : i32
    return %c0_i32, %c0_i32_0 : i32, i32
  }
  func.func @transform_7(%arg0: i32) -> (i32, i32) {
    %c0_i32 = arith.constant 0 : i32
    %c0_i32_0 = arith.constant 0 : i32
    %c0_i32_1 = arith.constant 0 : i32
    return %c0_i32, %c0_i32_0 : i32, i32
  }
  func.func @transform_8(%arg0: i32) -> (i32, i32, i32) {
    %c0_i32 = arith.constant 0 : i32
    %c0_i32_0 = arith.constant 0 : i32
    %c0_i32_1 = arith.constant 0 : i32
    %c0_i32_2 = arith.constant 0 : i32
    return %c0_i32, %c0_i32_0, %c0_i32_1 : i32, i32, i32
  }
  func.func @transform_9(%arg0: i32) -> (i32, i32, i32) {
    %c0_i32 = arith.constant 0 : i32
    %c0_i32_0 = arith.constant 0 : i32
    %c0_i32_1 = arith.constant 0 : i32
    %c0_i32_2 = arith.constant 0 : i32
    return %c0_i32, %c0_i32_0, %c0_i32_1 : i32, i32, i32
  }
}

</mosaic_0001>

<llo_original>
// kernel: _lstm_forward_seq.1
$region0: #{_lstm_forward_seq.1}
  #allocation0 [shape = 'u32[]', space=smem, size = 0x4, offset = 0x4, fixed_abs, tag = 'smem constant byte address 0x4 - core index']
  #allocation1 [shape = 'u32[144,128]{1,0:T(1,128)}', space=vmem, size = 0x12000, scoped, tag = 'internal scratch']
  %s0 = inlined_call_operand.vmem [shape: f32[1,1,128], index: 0, kind: input, shape index: {}]
  %s1 = inlined_call_operand.vmem [shape: f32[2,1,128], index: 1, kind: input, shape index: {}]
  %s2 = inlined_call_operand.vmem [shape: f32[2,1,128], index: 2, kind: input, shape index: {}]
  %s3 = inlined_call_operand.hbm [shape: f32[2,256,512], index: 3, kind: input, shape index: {}]
  %s4 = inlined_call_operand.vmem [shape: f32[2,1,512], index: 4, kind: input, shape index: {}]
  %s5 = inlined_call_operand.hbm [shape: f32[128,128], index: 5, kind: input, shape index: {}]
  %s6 = inlined_call_operand.vmem [shape: f32[1,128], index: 6, kind: input, shape index: {}]
  %s7 = inlined_call_operand.vmem [shape: f32[1,128], index: 7, kind: output, shape index: {0}]
  %s8 = inlined_call_operand.hbm [shape: f32[2,1,128], index: 8, kind: output, shape index: {1}]
  %s9 = inlined_call_operand.hbm [shape: f32[2,1,128], index: 9, kind: output, shape index: {2}]
  %10 = xla_tuple %s7, %s8, %s9
  %s11 = sld [smem:[#allocation0]]
  $region62: #{_lstm_forward_seq.1} parent=0
    _
  %s13 = ssub.s32 1, %s11
  %s14 = scalar_select 0, %s13, %s11
  $region1: #{_lstm_forward_seq.1} parent=0
    #allocation2 [shape = 'u8[1048576]{0}', space=vmem, size = 0x100000, scoped, tag = 'input window, operand 3, single buffered']
    #allocation3 [shape = 's32[1]{0}', space=sflag, size = 0x4, scoped, tag = 'scoped memory for _lstm_forward_seq.1']
    #allocation4 [shape = 's32[1]{0}', space=sflag, size = 0x4, scoped, tag = 'scoped memory for _lstm_forward_seq.1']
    #allocation5 [shape = 'u8[65536]{0}', space=vmem, size = 0x10000, scoped, tag = 'input window, operand 5, single buffered']
    #allocation6 [shape = 's32[1]{0}', space=sflag, size = 0x4, scoped, tag = 'scoped memory for _lstm_forward_seq.1']
    #allocation7 [shape = 'u8[1024]{0}', space=vmem, size = 0x400, scoped, tag = 'output window, operand 1, single buffered']
    #allocation8 [shape = 'u8[1024]{0}', space=vmem, size = 0x400, scoped, tag = 'output window, operand 2, single buffered']
    #allocation9 [shape = 's32[1]{0}', space=sflag, size = 0x4, scoped, tag = 'scoped memory for _lstm_forward_seq.1']
    %15 = vsyncpa [#allocation3], 0
    %16 = vsyncpa [#allocation6], 0
    %17 = vsyncpa [#allocation4], 0
    %18 = vsyncpa [#allocation9], 0
    // Predicated region
    $region2: #{_lstm_forward_seq.1} parent=1 // pred_check
      _
    $region3: #{_lstm_forward_seq.1} parent=1 // pred_check_branch
      %20 = sbr.rel (0) target = $region5
    $region4: #{_lstm_forward_seq.1} parent=1 // pred_region
      _
    $region5: #{_lstm_forward_seq.1} parent=1 // pred_fallthru
      _
    // Predicated region
    $region6: #{_lstm_forward_seq.1} parent=1 // pred_check
      _
    $region7: #{_lstm_forward_seq.1} parent=1 // pred_check_branch
      %22 = sbr.rel (0) target = $region9
    $region8: #{_lstm_forward_seq.1} parent=1 // pred_region
      _
    $region9: #{_lstm_forward_seq.1} parent=1 // pred_fallthru
      _
    // Predicated region
    $region10: #{_lstm_forward_seq.1} parent=1 // pred_check
      _
    $region11: #{_lstm_forward_seq.1} parent=1 // pred_check_branch
      %24 = sbr.rel (0) target = $region13
    $region12: #{_lstm_forward_seq.1} parent=1 // pred_region
      _
    $region13: #{_lstm_forward_seq.1} parent=1 // pred_fallthru
      _
    // Predicated region
    $region14: #{_lstm_forward_seq.1} parent=1 // pred_check
      _
    $region15: #{_lstm_forward_seq.1} parent=1 // pred_check_branch
      %26 = sbr.rel (0) target = $region17
    $region16: #{_lstm_forward_seq.1} parent=1 // pred_region
      %s28 = ssub.s32 32768, 32768
      %29 = vsyncadd [#allocation3], %s28
      %s30 = sshll.u32 [#allocation2], 4
      %s31 = int_to_ptr.vmem [resolvable:$true] %s30
      %36 = dma.hbm_to_vmem [thread:$0]  %s3, 32768, %s31, [#allocation3], 512, 512, 32
    $region17: #{_lstm_forward_seq.1} parent=1 // pred_fallthru
      _
    // Predicated region
    $region18: #{_lstm_forward_seq.1} parent=1 // pred_check
      _
    $region19: #{_lstm_forward_seq.1} parent=1 // pred_check_branch
      %38 = sbr.rel (0) target = $region21
    $region20: #{_lstm_forward_seq.1} parent=1 // pred_region
      _
    $region21: #{_lstm_forward_seq.1} parent=1 // pred_fallthru
      _
    // Predicated region
    $region22: #{_lstm_forward_seq.1} parent=1 // pred_check
      _
    $region23: #{_lstm_forward_seq.1} parent=1 // pred_check_branch
      %40 = sbr.rel (0) target = $region25
    $region24: #{_lstm_forward_seq.1} parent=1 // pred_region
      %s42 = ssub.s32 2048, 2048
      %43 = vsyncadd [#allocation6], %s42
      %s44 = sshll.u32 [#allocation5], 4
      %s45 = int_to_ptr.vmem [resolvable:$true] %s44
      %50 = dma.hbm_to_vmem [thread:$0]  %s5, 2048, %s45, [#allocation6], 128, 128, 8
    $region25: #{_lstm_forward_seq.1} parent=1 // pred_fallthru
      _
    // Predicated region
    $region26: #{_lstm_forward_seq.1} parent=1 // pred_check
      _
    $region27: #{_lstm_forward_seq.1} parent=1 // pred_check_branch
      %52 = sbr.rel (0) target = $region29
    $region28: #{_lstm_forward_seq.1} parent=1 // pred_region
      _
    $region29: #{_lstm_forward_seq.1} parent=1 // pred_fallthru
      _
    // Predicated region
    $region30: #{_lstm_forward_seq.1} parent=1 // pred_check
      _
    $region31: #{_lstm_forward_seq.1} parent=1 // pred_check_branch
      %54 = sbr.rel (0) target = $region33
    $region32: #{_lstm_forward_seq.1} parent=1 // pred_region
      %55 = dma.done [#allocation3], 32768
    $region33: #{_lstm_forward_seq.1} parent=1 // pred_fallthru
      _
    // Predicated region
    $region34: #{_lstm_forward_seq.1} parent=1 // pred_check
      _
    $region35: #{_lstm_forward_seq.1} parent=1 // pred_check_branch
      %57 = sbr.rel (0) target = $region37
    $region36: #{_lstm_forward_seq.1} parent=1 // pred_region
      %58 = dma.done [#allocation6], 2048
    $region37: #{_lstm_forward_seq.1} parent=1 // pred_fallthru
      _
    %v59 = vld [vmem:[%s1] sm:$0x1]
    %s60 = scalar_lea.vmem %s1, 1
    %v61 = vld [vmem:[%s60] sm:$0x1]
    %v62 = vld [vmem:[%s2] sm:$0x1]
    %s63 = scalar_lea.vmem %s2, 1
    %v64 = vld [vmem:[%s63] sm:$0x1]
    %v65 = vld [vmem:[%s0] sm:$0x1]
    %v66 = vld [vmem:[#allocation2] sm:$0xff]
    %v67 = vld [vmem:[#allocation2 + $0x8] sm:$0xff]
    %v68 = vld [vmem:[#allocation2 + $0x10] sm:$0xff]
    %v69 = vld [vmem:[#allocation2 + $0x18] sm:$0xff]
    %v70 = vld [vmem:[#allocation2 + $0x20] sm:$0xff]
    %v71 = vld [vmem:[#allocation2 + $0x28] sm:$0xff]
    %v72 = vld [vmem:[#allocation2 + $0x30] sm:$0xff]
    %v73 = vld [vmem:[#allocation2 + $0x38] sm:$0xff]
    %v74 = vld [vmem:[#allocation2 + $0x40] sm:$0xff]
    %v75 = vld [vmem:[#allocation2 + $0x48] sm:$0xff]
    %v76 = vld [vmem:[#allocation2 + $0x50] sm:$0xff]
    %v77 = vld [vmem:[#allocation2 + $0x58] sm:$0xff]
    %v78 = vld [vmem:[#allocation2 + $0x60] sm:$0xff]
    %v79 = vld [vmem:[#allocation2 + $0x68] sm:$0xff]
    %v80 = vld [vmem:[#allocation2 + $0x70] sm:$0xff]
    %v81 = vld [vmem:[#allocation2 + $0x78] sm:$0xff]
    %v82 = vld [vmem:[#allocation2 + $0x80] sm:$0xff]
    %v83 = vld [vmem:[#allocation2 + $0x88] sm:$0xff]
    %v84 = vld [vmem:[#allocation2 + $0x90] sm:$0xff]
    %v85 = vld [vmem:[#allocation2 + $0x98] sm:$0xff]
    %v86 = vld [vmem:[#allocation2 + $0xa0] sm:$0xff]
    %v87 = vld [vmem:[#allocation2 + $0xa8] sm:$0xff]
    %v88 = vld [vmem:[#allocation2 + $0xb0] sm:$0xff]
    %v89 = vld [vmem:[#allocation2 + $0xb8] sm:$0xff]
    %v90 = vld [vmem:[#allocation2 + $0xc0] sm:$0xff]
    %v91 = vld [vmem:[#allocation2 + $0xc8] sm:$0xff]
    %v92 = vld [vmem:[#allocation2 + $0xd0] sm:$0xff]
    %v93 = vld [vmem:[#allocation2 + $0xd8] sm:$0xff]
    %v94 = vld [vmem:[#allocation2 + $0xe0] sm:$0xff]
    %v95 = vld [vmem:[#allocation2 + $0xe8] sm:$0xff]
    %v96 = vld [vmem:[#allocation2 + $0xf0] sm:$0xff]
    %v97 = vld [vmem:[#allocation2 + $0xf8] sm:$0xff]
    %v98 = vld [vmem:[#allocation2 + $0x100] sm:$0xff]
    %v99 = vld [vmem:[#allocation2 + $0x108] sm:$0xff]
    %v100 = vld [vmem:[#allocation2 + $0x110] sm:$0xff]
    %v101 = vld [vmem:[#allocation2 + $0x118] sm:$0xff]
    %v102 = vld [vmem:[#allocation2 + $0x120] sm:$0xff]
    %v103 = vld [vmem:[#allocation2 + $0x128] sm:$0xff]
    %v104 = vld [vmem:[#allocation2 + $0x130] sm:$0xff]
    %v105 = vld [vmem:[#allocation2 + $0x138] sm:$0xff]
    %v106 = vld [vmem:[#allocation2 + $0x140] sm:$0xff]
    %v107 = vld [vmem:[#allocation2 + $0x148] sm:$0xff]
    %v108 = vld [vmem:[#allocation2 + $0x150] sm:$0xff]
    %v109 = vld [vmem:[#allocation2 + $0x158] sm:$0xff]
    %v110 = vld [vmem:[#allocation2 + $0x160] sm:$0xff]
    %v111 = vld [vmem:[#allocation2 + $0x168] sm:$0xff]
    %v112 = vld [vmem:[#allocation2 + $0x170] sm:$0xff]
    %v113 = vld [vmem:[#allocation2 + $0x178] sm:$0xff]
    %v114 = vld [vmem:[#allocation2 + $0x180] sm:$0xff]
    %v115 = vld [vmem:[#allocation2 + $0x188] sm:$0xff]
    %v116 = vld [vmem:[#allocation2 + $0x190] sm:$0xff]
    %v117 = vld [vmem:[#allocation2 + $0x198] sm:$0xff]
    %v118 = vld [vmem:[#allocation2 + $0x1a0] sm:$0xff]
    %v119 = vld [vmem:[#allocation2 + $0x1a8] sm:$0xff]
    %v120 = vld [vmem:[#allocation2 + $0x1b0] sm:$0xff]
    %v121 = vld [vmem:[#allocation2 + $0x1b8] sm:$0xff]
    %v122 = vld [vmem:[#allocation2 + $0x1c0] sm:$0xff]
    %v123 = vld [vmem:[#allocation2 + $0x1c8] sm:$0xff]
    %v124 = vld [vmem:[#allocation2 + $0x1d0] sm:$0xff]
    %v125 = vld [vmem:[#allocation2 + $0x1d8] sm:$0xff]
    %v126 = vld [vmem:[#allocation2 + $0x1e0] sm:$0xff]
    %v127 = vld [vmem:[#allocation2 + $0x1e8] sm:$0xff]
    %v128 = vld [vmem:[#allocation2 + $0x1f0] sm:$0xff]
    %v129 = vld [vmem:[#allocation2 + $0x1f8] sm:$0xff]
    %v130 = vld [vmem:[#allocation2 + $0x200] sm:$0xff]
    %v131 = vld [vmem:[#allocation2 + $0x208] sm:$0xff]
    %v132 = vld [vmem:[#allocation2 + $0x210] sm:$0xff]
    %v133 = vld [vmem:[#allocation2 + $0x218] sm:$0xff]
    %v134 = vld [vmem:[#allocation2 + $0x220] sm:$0xff]
    %v135 = vld [vmem:[#allocation2 + $0x228] sm:$0xff]
    %v136 = vld [vmem:[#allocation2 + $0x230] sm:$0xff]
    %v137 = vld [vmem:[#allocation2 + $0x238] sm:$0xff]
    %v138 = vld [vmem:[#allocation2 + $0x240] sm:$0xff]
    %v139 = vld [vmem:[#allocation2 + $0x248] sm:$0xff]
    %v140 = vld [vmem:[#allocation2 + $0x250] sm:$0xff]
    %v141 = vld [vmem:[#allocation2 + $0x258] sm:$0xff]
    %v142 = vld [vmem:[#allocation2 + $0x260] sm:$0xff]
    %v143 = vld [vmem:[#allocation2 + $0x268] sm:$0xff]
    %v144 = vld [vmem:[#allocation2 + $0x270] sm:$0xff]
    %v145 = vld [vmem:[#allocation2 + $0x278] sm:$0xff]
    %v146 = vld [vmem:[#allocation2 + $0x280] sm:$0xff]
    %v147 = vld [vmem:[#allocation2 + $0x288] sm:$0xff]
    %v148 = vld [vmem:[#allocation2 + $0x290] sm:$0xff]
    %v149 = vld [vmem:[#allocation2 + $0x298] sm:$0xff]
    %v150 = vld [vmem:[#allocation2 + $0x2a0] sm:$0xff]
    %v151 = vld [vmem:[#allocation2 + $0x2a8] sm:$0xff]
    %v152 = vld [vmem:[#allocation2 + $0x2b0] sm:$0xff]
    %v153 = vld [vmem:[#allocation2 + $0x2b8] sm:$0xff]
    %v154 = vld [vmem:[#allocation2 + $0x2c0] sm:$0xff]
    %v155 = vld [vmem:[#allocation2 + $0x2c8] sm:$0xff]
    %v156 = vld [vmem:[#allocation2 + $0x2d0] sm:$0xff]
    %v157 = vld [vmem:[#allocation2 + $0x2d8] sm:$0xff]
    %v158 = vld [vmem:[#allocation2 + $0x2e0] sm:$0xff]
    %v159 = vld [vmem:[#allocation2 + $0x2e8] sm:$0xff]
    %v160 = vld [vmem:[#allocation2 + $0x2f0] sm:$0xff]
    %v161 = vld [vmem:[#allocation2 + $0x2f8] sm:$0xff]
    %v162 = vld [vmem:[#allocation2 + $0x300] sm:$0xff]
    %v163 = vld [vmem:[#allocation2 + $0x308] sm:$0xff]
    %v164 = vld [vmem:[#allocation2 + $0x310] sm:$0xff]
    %v165 = vld [vmem:[#allocation2 + $0x318] sm:$0xff]
    %v166 = vld [vmem:[#allocation2 + $0x320] sm:$0xff]
    %v167 = vld [vmem:[#allocation2 + $0x328] sm:$0xff]
    %v168 = vld [vmem:[#allocation2 + $0x330] sm:$0xff]
    %v169 = vld [vmem:[#allocation2 + $0x338] sm:$0xff]
    %v170 = vld [vmem:[#allocation2 + $0x340] sm:$0xff]
    %v171 = vld [vmem:[#allocation2 + $0x348] sm:$0xff]
    %v172 = vld [vmem:[#allocation2 + $0x350] sm:$0xff]
    %v173 = vld [vmem:[#allocation2 + $0x358] sm:$0xff]
    %v174 = vld [vmem:[#allocation2 + $0x360] sm:$0xff]
    %v175 = vld [vmem:[#allocation2 + $0x368] sm:$0xff]
    %v176 = vld [vmem:[#allocation2 + $0x370] sm:$0xff]
    %v177 = vld [vmem:[#allocation2 + $0x378] sm:$0xff]
    %v178 = vld [vmem:[#allocation2 + $0x380] sm:$0xff]
    %v179 = vld [vmem:[#allocation2 + $0x388] sm:$0xff]
    %v180 = vld [vmem:[#allocation2 + $0x390] sm:$0xff]
    %v181 = vld [vmem:[#allocation2 + $0x398] sm:$0xff]
    %v182 = vld [vmem:[#allocation2 + $0x3a0] sm:$0xff]
    %v183 = vld [vmem:[#allocation2 + $0x3a8] sm:$0xff]
    %v184 = vld [vmem:[#allocation2 + $0x3b0] sm:$0xff]
    %v185 = vld [vmem:[#allocation2 + $0x3b8] sm:$0xff]
    %v186 = vld [vmem:[#allocation2 + $0x3c0] sm:$0xff]
    %v187 = vld [vmem:[#allocation2 + $0x3c8] sm:$0xff]
    %v188 = vld [vmem:[#allocation2 + $0x3d0] sm:$0xff]
    %v189 = vld [vmem:[#allocation2 + $0x3d8] sm:$0xff]
    %v190 = vld [vmem:[#allocation2 + $0x3e0] sm:$0xff]
    %v191 = vld [vmem:[#allocation2 + $0x3e8] sm:$0xff]
    %v192 = vld [vmem:[#allocation2 + $0x3f0] sm:$0xff]
    %v193 = vld [vmem:[#allocation2 + $0x3f8] sm:$0xff]
    %v194 = vld [vmem:[%s4] sm:$0xf]
    %v196 = vlaneseq
    %v197 = vshrl.u32 %v196, 7
    %v198 = vsub.s32 0, %v197
    %v199 = vrot.slane %v194, %v198
    %v200 = vlaneseq
    %v201 = vshrl.u32 %v200, 7
    %v202 = vsub.s32 1, %v201
    %v203 = vrot.slane %v194, %v202
    %v204 = vlaneseq
    %v205 = vshrl.u32 %v204, 7
    %v206 = vsub.s32 2, %v205
    %v207 = vrot.slane %v194, %v206
    %v208 = vlaneseq
    %v209 = vshrl.u32 %v208, 7
    %v210 = vsub.s32 3, %v209
    %v211 = vrot.slane %v194, %v210
    %216 = vmatprep.subr.mxu0 %v127
    %217 = vmatpush1.msra.mxu0 %v126
    %218 = vmatprep.subr.mxu0 %v123
    %219 = vmatpush1.msra.mxu0 %v122
    %220 = vmatprep.subr.mxu0 %v119
    %221 = vmatpush1.msra.mxu0 %v118
    %222 = vmatprep.subr.mxu0 %v115
    %223 = vmatpush1.msra.mxu0 %v114
    %224 = vmatprep.subr.mxu0 %v111
    %225 = vmatpush1.msra.mxu0 %v110
    %226 = vmatprep.subr.mxu0 %v107
    %227 = vmatpush1.msra.mxu0 %v106
    %228 = vmatprep.subr.mxu0 %v103
    %229 = vmatpush1.msra.mxu0 %v102
    %230 = vmatprep.subr.mxu0 %v99
    %231 = vmatpush1.msra.mxu0 %v98
    %232 = vmatprep.subr.mxu0 %v95
    %233 = vmatpush1.msra.mxu0 %v94
    %234 = vmatprep.subr.mxu0 %v91
    %235 = vmatpush1.msra.mxu0 %v90
    %236 = vmatprep.subr.mxu0 %v87
    %237 = vmatpush1.msra.mxu0 %v86
    %238 = vmatprep.subr.mxu0 %v83
    %239 = vmatpush1.msra.mxu0 %v82
    %240 = vmatprep.subr.mxu0 %v79
    %241 = vmatpush1.msra.mxu0 %v78
    %242 = vmatprep.subr.mxu0 %v75
    %243 = vmatpush1.msra.mxu0 %v74
    %244 = vmatprep.subr.mxu0 %v71
    %245 = vmatpush1.msra.mxu0 %v70
    %246 = vmatprep.subr.mxu0 %v67
    %247 = vmatpush1.msra.mxu0 %v66
    %248 = vmatprep.subr.mxu0 %v191
    %249 = vmatpush2.msra.mxu0 %v190
    %250 = vmatprep.subr.mxu0 %v187
    %251 = vmatpush2.msra.mxu0 %v186
    %252 = vmatprep.subr.mxu0 %v183
    %253 = vmatpush2.msra.mxu0 %v182
    %254 = vmatprep.subr.mxu0 %v179
    %255 = vmatpush2.msra.mxu0 %v178
    %256 = vmatprep.subr.mxu0 %v175
    %257 = vmatpush2.msra.mxu0 %v174
    %258 = vmatprep.subr.mxu0 %v171
    %259 = vmatpush2.msra.mxu0 %v170
    %260 = vmatprep.subr.mxu0 %v167
    %261 = vmatpush2.msra.mxu0 %v166
    %262 = vmatprep.subr.mxu0 %v163
    %263 = vmatpush2.msra.mxu0 %v162
    %264 = vmatprep.subr.mxu0 %v159
    %265 = vmatpush2.msra.mxu0 %v158
    %266 = vmatprep.subr.mxu0 %v155
    %267 = vmatpush2.msra.mxu0 %v154
    %268 = vmatprep.subr.mxu0 %v151
    %269 = vmatpush2.msra.mxu0 %v150
    %270 = vmatprep.subr.mxu0 %v147
    %271 = vmatpush2.msra.mxu0 %v146
    %272 = vmatprep.subr.mxu0 %v143
    %273 = vmatpush2.msra.mxu0 %v142
    %274 = vmatprep.subr.mxu0 %v139
    %275 = vmatpush2.msra.mxu0 %v138
    %276 = vmatprep.subr.mxu0 %v135
    %277 = vmatpush2.msra.mxu0 %v134
    %278 = vmatprep.subr.mxu0 %v131
    %279 = vmatpush2.msra.mxu0 %v130
    %280 = vmatprep.mubr.f32.mxu0 %v59
    %281 = vmatmul.mubr.f32.gmra.mxu0 %v65
    %v282 = vpop.f32.mrf.mxu0
    %v283 = vadd.f32 %v199, %v282
    %v284 = vpop.f32.mrf.mxu0
    %v285 = vadd.f32 %v203, %v284
    %286 = vdwg.mxu0
    %287 = vmatprep.subr.mxu0 %v129
    %288 = vmatpush1.msra.mxu0 %v128
    %289 = vmatprep.subr.mxu0 %v125
    %290 = vmatpush1.msra.mxu0 %v124
    %291 = vmatprep.subr.mxu0 %v121
    %292 = vmatpush1.msra.mxu0 %v120
    %293 = vmatprep.subr.mxu0 %v117
    %294 = vmatpush1.msra.mxu0 %v116
    %295 = vmatprep.subr.mxu0 %v113
    %296 = vmatpush1.msra.mxu0 %v112
    %297 = vmatprep.subr.mxu0 %v109
    %298 = vmatpush1.msra.mxu0 %v108
    %299 = vmatprep.subr.mxu0 %v105
    %300 = vmatpush1.msra.mxu0 %v104
    %301 = vmatprep.subr.mxu0 %v101
    %302 = vmatpush1.msra.mxu0 %v100
    %303 = vmatprep.subr.mxu0 %v97
    %304 = vmatpush1.msra.mxu0 %v96
    %305 = vmatprep.subr.mxu0 %v93
    %306 = vmatpush1.msra.mxu0 %v92
    %307 = vmatprep.subr.mxu0 %v89
    %308 = vmatpush1.msra.mxu0 %v88
    %309 = vmatprep.subr.mxu0 %v85
    %310 = vmatpush1.msra.mxu0 %v84
    %311 = vmatprep.subr.mxu0 %v81
    %312 = vmatpush1.msra.mxu0 %v80
    %313 = vmatprep.subr.mxu0 %v77
    %314 = vmatpush1.msra.mxu0 %v76
    %315 = vmatprep.subr.mxu0 %v73
    %316 = vmatpush1.msra.mxu0 %v72
    %317 = vmatprep.subr.mxu0 %v69
    %318 = vmatpush1.msra.mxu0 %v68
    %319 = vmatprep.subr.mxu0 %v193
    %320 = vmatpush2.msra.mxu0 %v192
    %321 = vmatprep.subr.mxu0 %v189
    %322 = vmatpush2.msra.mxu0 %v188
    %323 = vmatprep.subr.mxu0 %v185
    %324 = vmatpush2.msra.mxu0 %v184
    %325 = vmatprep.subr.mxu0 %v181
    %326 = vmatpush2.msra.mxu0 %v180
    %327 = vmatprep.subr.mxu0 %v177
    %328 = vmatpush2.msra.mxu0 %v176
    %329 = vmatprep.subr.mxu0 %v173
    %330 = vmatpush2.msra.mxu0 %v172
    %331 = vmatprep.subr.mxu0 %v169
    %332 = vmatpush2.msra.mxu0 %v168
    %333 = vmatprep.subr.mxu0 %v165
    %334 = vmatpush2.msra.mxu0 %v164
    %335 = vmatprep.subr.mxu0 %v161
    %336 = vmatpush2.msra.mxu0 %v160
    %337 = vmatprep.subr.mxu0 %v157
    %338 = vmatpush2.msra.mxu0 %v156
    %339 = vmatprep.subr.mxu0 %v153
    %340 = vmatpush2.msra.mxu0 %v152
    %341 = vmatprep.subr.mxu0 %v149
    %342 = vmatpush2.msra.mxu0 %v148
    %343 = vmatprep.subr.mxu0 %v145
    %344 = vmatpush2.msra.mxu0 %v144
    %345 = vmatprep.subr.mxu0 %v141
    %346 = vmatpush2.msra.mxu0 %v140
    %347 = vmatprep.subr.mxu0 %v137
    %348 = vmatpush2.msra.mxu0 %v136
    %349 = vmatprep.subr.mxu0 %v133
    %350 = vmatpush2.msra.mxu0 %v132
    %351 = vmatprep.mubr.f32.mxu0 %v59
    %352 = vmatmul.mubr.f32.gmra.mxu0 %v65
    %v353 = vpop.f32.mrf.mxu0
    %v354 = vadd.f32 %v207, %v353
    %v355 = vpop.f32.mrf.mxu0
    %v356 = vadd.f32 %v211, %v355
    %357 = vdwg.mxu0
    %v358 = vxor.u32 %v283, 2147483648
    %v359 = vmul.f32 %v358, 1.442695
    %v360 = vpow.pop %v359
    %v361 = vadd.f32 %v360, 1.0
    %v362 = vrcp.pop %v361
    %v363 = vmul.f32 1.0, %v362
    %v364 = vxor.u32 %v285, 2147483648
    %v365 = vmul.f32 %v364, 1.442695
    %v366 = vpow.pop %v365
    %v367 = vadd.f32 %v366, 1.0
    %v368 = vrcp.pop %v367
    %v369 = vmul.f32 1.0, %v368
    %v370 = vtanh.pop %v354
    %v371 = vxor.u32 %v356, 2147483648
    %v372 = vmul.f32 %v371, 1.442695
    %v373 = vpow.pop %v372
    %v374 = vadd.f32 %v373, 1.0
    %v375 = vrcp.pop %v374
    %v376 = vmul.f32 1.0, %v375
    %v377 = vmul.f32 %v369, %v62
    %v378 = vmul.f32 %v363, %v370
    %v379 = vadd.f32 %v377, %v378
    %v380 = vtanh.pop %v379
    %v381 = vmul.f32 %v376, %v380
    %s382 = scalar_lea.vmem [#allocation2], 1024
    %v383 = vld [vmem:[%s382] sm:$0xff]
    %v384 = vld [vmem:[%s382 + $0x8] sm:$0xff]
    %v385 = vld [vmem:[%s382 + $0x10] sm:$0xff]
    %v386 = vld [vmem:[%s382 + $0x18] sm:$0xff]
    %v387 = vld [vmem:[%s382 + $0x20] sm:$0xff]
    %v388 = vld [vmem:[%s382 + $0x28] sm:$0xff]
    %v389 = vld [vmem:[%s382 + $0x30] sm:$0xff]
    %v390 = vld [vmem:[%s382 + $0x38] sm:$0xff]
    %v391 = vld [vmem:[%s382 + $0x40] sm:$0xff]
    %v392 = vld [vmem:[%s382 + $0x48] sm:$0xff]
    %v393 = vld [vmem:[%s382 + $0x50] sm:$0xff]
    %v394 = vld [vmem:[%s382 + $0x58] sm:$0xff]
    %v395 = vld [vmem:[%s382 + $0x60] sm:$0xff]
    %v396 = vld [vmem:[%s382 + $0x68] sm:$0xff]
    %v397 = vld [vmem:[%s382 + $0x70] sm:$0xff]
    %v398 = vld [vmem:[%s382 + $0x78] sm:$0xff]
    %v399 = vld [vmem:[%s382 + $0x80] sm:$0xff]
    %v400 = vld [vmem:[%s382 + $0x88] sm:$0xff]
    %v401 = vld [vmem:[%s382 + $0x90] sm:$0xff]
    %v402 = vld [vmem:[%s382 + $0x98] sm:$0xff]
    %v403 = vld [vmem:[%s382 + $0xa0] sm:$0xff]
    %v404 = vld [vmem:[%s382 + $0xa8] sm:$0xff]
    %v405 = vld [vmem:[%s382 + $0xb0] sm:$0xff]
    %v406 = vld [vmem:[%s382 + $0xb8] sm:$0xff]
    %v407 = vld [vmem:[%s382 + $0xc0] sm:$0xff]
    %v408 = vld [vmem:[%s382 + $0xc8] sm:$0xff]
    %v409 = vld [vmem:[%s382 + $0xd0] sm:$0xff]
    %v410 = vld [vmem:[%s382 + $0xd8] sm:$0xff]
    %v411 = vld [vmem:[%s382 + $0xe0] sm:$0xff]
    %v412 = vld [vmem:[%s382 + $0xe8] sm:$0xff]
    %v413 = vld [vmem:[%s382 + $0xf0] sm:$0xff]
    %v414 = vld [vmem:[%s382 + $0xf8] sm:$0xff]
    %v415 = vld [vmem:[%s382 + $0x100] sm:$0xff]
    %v416 = vld [vmem:[%s382 + $0x108] sm:$0xff]
    %v417 = vld [vmem:[%s382 + $0x110] sm:$0xff]
    %v418 = vld [vmem:[%s382 + $0x118] sm:$0xff]
    %v419 = vld [vmem:[%s382 + $0x120] sm:$0xff]
    %v420 = vld [vmem:[%s382 + $0x128] sm:$0xff]
    %v421 = vld [vmem:[%s382 + $0x130] sm:$0xff]
    %v422 = vld [vmem:[%s382 + $0x138] sm:$0xff]
    %v423 = vld [vmem:[%s382 + $0x140] sm:$0xff]
    %v424 = vld [vmem:[%s382 + $0x148] sm:$0xff]
    %v425 = vld [vmem:[%s382 + $0x150] sm:$0xff]
    %v426 = vld [vmem:[%s382 + $0x158] sm:$0xff]
    %v427 = vld [vmem:[%s382 + $0x160] sm:$0xff]
    %v428 = vld [vmem:[%s382 + $0x168] sm:$0xff]
    %v429 = vld [vmem:[%s382 + $0x170] sm:$0xff]
    %v430 = vld [vmem:[%s382 + $0x178] sm:$0xff]
    %v431 = vld [vmem:[%s382 + $0x180] sm:$0xff]
    %v432 = vld [vmem:[%s382 + $0x188] sm:$0xff]
    %v433 = vld [vmem:[%s382 + $0x190] sm:$0xff]
    %v434 = vld [vmem:[%s382 + $0x198] sm:$0xff]
    %v435 = vld [vmem:[%s382 + $0x1a0] sm:$0xff]
    %v436 = vld [vmem:[%s382 + $0x1a8] sm:$0xff]
    %v437 = vld [vmem:[%s382 + $0x1b0] sm:$0xff]
    %v438 = vld [vmem:[%s382 + $0x1b8] sm:$0xff]
    %v439 = vld [vmem:[%s382 + $0x1c0] sm:$0xff]
    %v440 = vld [vmem:[%s382 + $0x1c8] sm:$0xff]
    %v441 = vld [vmem:[%s382 + $0x1d0] sm:$0xff]
    %v442 = vld [vmem:[%s382 + $0x1d8] sm:$0xff]
    %v443 = vld [vmem:[%s382 + $0x1e0] sm:$0xff]
    %v444 = vld [vmem:[%s382 + $0x1e8] sm:$0xff]
    %v445 = vld [vmem:[%s382 + $0x1f0] sm:$0xff]
    %v446 = vld [vmem:[%s382 + $0x1f8] sm:$0xff]
    %v447 = vld [vmem:[%s382 + $0x200] sm:$0xff]
    %v448 = vld [vmem:[%s382 + $0x208] sm:$0xff]
    %v449 = vld [vmem:[%s382 + $0x210] sm:$0xff]
    %v450 = vld [vmem:[%s382 + $0x218] sm:$0xff]
    %v451 = vld [vmem:[%s382 + $0x220] sm:$0xff]
    %v452 = vld [vmem:[%s382 + $0x228] sm:$0xff]
    %v453 = vld [vmem:[%s382 + $0x230] sm:$0xff]
    %v454 = vld [vmem:[%s382 + $0x238] sm:$0xff]
    %v455 = vld [vmem:[%s382 + $0x240] sm:$0xff]
    %v456 = vld [vmem:[%s382 + $0x248] sm:$0xff]
    %v457 = vld [vmem:[%s382 + $0x250] sm:$0xff]
    %v458 = vld [vmem:[%s382 + $0x258] sm:$0xff]
    %v459 = vld [vmem:[%s382 + $0x260] sm:$0xff]
    %v460 = vld [vmem:[%s382 + $0x268] sm:$0xff]
    %v461 = vld [vmem:[%s382 + $0x270] sm:$0xff]
    %v462 = vld [vmem:[%s382 + $0x278] sm:$0xff]
    %v463 = vld [vmem:[%s382 + $0x280] sm:$0xff]
    %v464 = vld [vmem:[%s382 + $0x288] sm:$0xff]
    %v465 = vld [vmem:[%s382 + $0x290] sm:$0xff]
    %v466 = vld [vmem:[%s382 + $0x298] sm:$0xff]
    %v467 = vld [vmem:[%s382 + $0x2a0] sm:$0xff]
    %v468 = vld [vmem:[%s382 + $0x2a8] sm:$0xff]
    %v469 = vld [vmem:[%s382 + $0x2b0] sm:$0xff]
    %v470 = vld [vmem:[%s382 + $0x2b8] sm:$0xff]
    %v471 = vld [vmem:[%s382 + $0x2c0] sm:$0xff]
    %v472 = vld [vmem:[%s382 + $0x2c8] sm:$0xff]
    %v473 = vld [vmem:[%s382 + $0x2d0] sm:$0xff]
    %v474 = vld [vmem:[%s382 + $0x2d8] sm:$0xff]
    %v475 = vld [vmem:[%s382 + $0x2e0] sm:$0xff]
    %v476 = vld [vmem:[%s382 + $0x2e8] sm:$0xff]
    %v477 = vld [vmem:[%s382 + $0x2f0] sm:$0xff]
    %v478 = vld [vmem:[%s382 + $0x2f8] sm:$0xff]
    %v479 = vld [vmem:[%s382 + $0x300] sm:$0xff]
    %v480 = vld [vmem:[%s382 + $0x308] sm:$0xff]
    %v481 = vld [vmem:[%s382 + $0x310] sm:$0xff]
    %v482 = vld [vmem:[%s382 + $0x318] sm:$0xff]
    %v483 = vld [vmem:[%s382 + $0x320] sm:$0xff]
    %v484 = vld [vmem:[%s382 + $0x328] sm:$0xff]
    %v485 = vld [vmem:[%s382 + $0x330] sm:$0xff]
    %v486 = vld [vmem:[%s382 + $0x338] sm:$0xff]
    %v487 = vld [vmem:[%s382 + $0x340] sm:$0xff]
    %v488 = vld [vmem:[%s382 + $0x348] sm:$0xff]
    %v489 = vld [vmem:[%s382 + $0x350] sm:$0xff]
    %v490 = vld [vmem:[%s382 + $0x358] sm:$0xff]
    %v491 = vld [vmem:[%s382 + $0x360] sm:$0xff]
    %v492 = vld [vmem:[%s382 + $0x368] sm:$0xff]
    %v493 = vld [vmem:[%s382 + $0x370] sm:$0xff]
    %v494 = vld [vmem:[%s382 + $0x378] sm:$0xff]
    %v495 = vld [vmem:[%s382 + $0x380] sm:$0xff]
    %v496 = vld [vmem:[%s382 + $0x388] sm:$0xff]
    %v497 = vld [vmem:[%s382 + $0x390] sm:$0xff]
    %v498 = vld [vmem:[%s382 + $0x398] sm:$0xff]
    %v499 = vld [vmem:[%s382 + $0x3a0] sm:$0xff]
    %v500 = vld [vmem:[%s382 + $0x3a8] sm:$0xff]
    %v501 = vld [vmem:[%s382 + $0x3b0] sm:$0xff]
    %v502 = vld [vmem:[%s382 + $0x3b8] sm:$0xff]
    %v503 = vld [vmem:[%s382 + $0x3c0] sm:$0xff]
    %v504 = vld [vmem:[%s382 + $0x3c8] sm:$0xff]
    %v505 = vld [vmem:[%s382 + $0x3d0] sm:$0xff]
    %v506 = vld [vmem:[%s382 + $0x3d8] sm:$0xff]
    %v507 = vld [vmem:[%s382 + $0x3e0] sm:$0xff]
    %v508 = vld [vmem:[%s382 + $0x3e8] sm:$0xff]
    %v509 = vld [vmem:[%s382 + $0x3f0] sm:$0xff]
    %v510 = vld [vmem:[%s382 + $0x3f8] sm:$0xff]
    %s511 = scalar_lea.vmem %s4, 4
    %v512 = vld [vmem:[%s511] sm:$0xf]
    %v514 = vlaneseq
    %v515 = vshrl.u32 %v514, 7
    %v516 = vsub.s32 0, %v515
    %v517 = vrot.slane %v512, %v516
    %v518 = vlaneseq
    %v519 = vshrl.u32 %v518, 7
    %v520 = vsub.s32 1, %v519
    %v521 = vrot.slane %v512, %v520
    %v522 = vlaneseq
    %v523 = vshrl.u32 %v522, 7
    %v524 = vsub.s32 2, %v523
    %v525 = vrot.slane %v512, %v524
    %v526 = vlaneseq
    %v527 = vshrl.u32 %v526, 7
    %v528 = vsub.s32 3, %v527
    %v529 = vrot.slane %v512, %v528
    %534 = vmatprep.subr.mxu0 %v444
    %535 = vmatpush1.msra.mxu0 %v443
    %536 = vmatprep.subr.mxu0 %v440
    %537 = vmatpush1.msra.mxu0 %v439
    %538 = vmatprep.subr.mxu0 %v436
    %539 = vmatpush1.msra.mxu0 %v435
    %540 = vmatprep.subr.mxu0 %v432
    %541 = vmatpush1.msra.mxu0 %v431
    %542 = vmatprep.subr.mxu0 %v428
    %543 = vmatpush1.msra.mxu0 %v427
    %544 = vmatprep.subr.mxu0 %v424
    %545 = vmatpush1.msra.mxu0 %v423
    %546 = vmatprep.subr.mxu0 %v420
    %547 = vmatpush1.msra.mxu0 %v419
    %548 = vmatprep.subr.mxu0 %v416
    %549 = vmatpush1.msra.mxu0 %v415
    %550 = vmatprep.subr.mxu0 %v412
    %551 = vmatpush1.msra.mxu0 %v411
    %552 = vmatprep.subr.mxu0 %v408
    %553 = vmatpush1.msra.mxu0 %v407
    %554 = vmatprep.subr.mxu0 %v404
    %555 = vmatpush1.msra.mxu0 %v403
    %556 = vmatprep.subr.mxu0 %v400
    %557 = vmatpush1.msra.mxu0 %v399
    %558 = vmatprep.subr.mxu0 %v396
    %559 = vmatpush1.msra.mxu0 %v395
    %560 = vmatprep.subr.mxu0 %v392
    %561 = vmatpush1.msra.mxu0 %v391
    %562 = vmatprep.subr.mxu0 %v388
    %563 = vmatpush1.msra.mxu0 %v387
    %564 = vmatprep.subr.mxu0 %v384
    %565 = vmatpush1.msra.mxu0 %v383
    %566 = vmatprep.subr.mxu0 %v508
    %567 = vmatpush2.msra.mxu0 %v507
    %568 = vmatprep.subr.mxu0 %v504
    %569 = vmatpush2.msra.mxu0 %v503
    %570 = vmatprep.subr.mxu0 %v500
    %571 = vmatpush2.msra.mxu0 %v499
    %572 = vmatprep.subr.mxu0 %v496
    %573 = vmatpush2.msra.mxu0 %v495
    %574 = vmatprep.subr.mxu0 %v492
    %575 = vmatpush2.msra.mxu0 %v491
    %576 = vmatprep.subr.mxu0 %v488
    %577 = vmatpush2.msra.mxu0 %v487
    %578 = vmatprep.subr.mxu0 %v484
    %579 = vmatpush2.msra.mxu0 %v483
    %580 = vmatprep.subr.mxu0 %v480
    %581 = vmatpush2.msra.mxu0 %v479
    %582 = vmatprep.subr.mxu0 %v476
    %583 = vmatpush2.msra.mxu0 %v475
    %584 = vmatprep.subr.mxu0 %v472
    %585 = vmatpush2.msra.mxu0 %v471
    %586 = vmatprep.subr.mxu0 %v468
    %587 = vmatpush2.msra.mxu0 %v467
    %588 = vmatprep.subr.mxu0 %v464
    %589 = vmatpush2.msra.mxu0 %v463
    %590 = vmatprep.subr.mxu0 %v460
    %591 = vmatpush2.msra.mxu0 %v459
    %592 = vmatprep.subr.mxu0 %v456
    %593 = vmatpush2.msra.mxu0 %v455
    %594 = vmatprep.subr.mxu0 %v452
    %595 = vmatpush2.msra.mxu0 %v451
    %596 = vmatprep.subr.mxu0 %v448
    %597 = vmatpush2.msra.mxu0 %v447
    %598 = vmatprep.mubr.f32.mxu0 %v61
    %599 = vmatmul.mubr.f32.gmra.mxu0 %v381
    %v600 = vpop.f32.mrf.mxu0
    %v601 = vadd.f32 %v517, %v600
    %v602 = vpop.f32.mrf.mxu0
    %v603 = vadd.f32 %v521, %v602
    %604 = vdwg.mxu0
    %605 = vmatprep.subr.mxu0 %v446
    %606 = vmatpush1.msra.mxu0 %v445
    %607 = vmatprep.subr.mxu0 %v442
    %608 = vmatpush1.msra.mxu0 %v441
    %609 = vmatprep.subr.mxu0 %v438
    %610 = vmatpush1.msra.mxu0 %v437
    %611 = vmatprep.subr.mxu0 %v434
    %612 = vmatpush1.msra.mxu0 %v433
    %613 = vmatprep.subr.mxu0 %v430
    %614 = vmatpush1.msra.mxu0 %v429
    %615 = vmatprep.subr.mxu0 %v426
    %616 = vmatpush1.msra.mxu0 %v425
    %617 = vmatprep.subr.mxu0 %v422
    %618 = vmatpush1.msra.mxu0 %v421
    %619 = vmatprep.subr.mxu0 %v418
    %620 = vmatpush1.msra.mxu0 %v417
    %621 = vmatprep.subr.mxu0 %v414
    %622 = vmatpush1.msra.mxu0 %v413
    %623 = vmatprep.subr.mxu0 %v410
    %624 = vmatpush1.msra.mxu0 %v409
    %625 = vmatprep.subr.mxu0 %v406
    %626 = vmatpush1.msra.mxu0 %v405
    %627 = vmatprep.subr.mxu0 %v402
    %628 = vmatpush1.msra.mxu0 %v401
    %629 = vmatprep.subr.mxu0 %v398
    %630 = vmatpush1.msra.mxu0 %v397
    %631 = vmatprep.subr.mxu0 %v394
    %632 = vmatpush1.msra.mxu0 %v393
    %633 = vmatprep.subr.mxu0 %v390
    %634 = vmatpush1.msra.mxu0 %v389
    %635 = vmatprep.subr.mxu0 %v386
    %636 = vmatpush1.msra.mxu0 %v385
    %637 = vmatprep.subr.mxu0 %v510
    %638 = vmatpush2.msra.mxu0 %v509
    %639 = vmatprep.subr.mxu0 %v506
    %640 = vmatpush2.msra.mxu0 %v505
    %641 = vmatprep.subr.mxu0 %v502
    %642 = vmatpush2.msra.mxu0 %v501
    %643 = vmatprep.subr.mxu0 %v498
    %644 = vmatpush2.msra.mxu0 %v497
    %645 = vmatprep.subr.mxu0 %v494
    %646 = vmatpush2.msra.mxu0 %v493
    %647 = vmatprep.subr.mxu0 %v490
    %648 = vmatpush2.msra.mxu0 %v489
    %649 = vmatprep.subr.mxu0 %v486
    %650 = vmatpush2.msra.mxu0 %v485
    %651 = vmatprep.subr.mxu0 %v482
    %652 = vmatpush2.msra.mxu0 %v481
    %653 = vmatprep.subr.mxu0 %v478
    %654 = vmatpush2.msra.mxu0 %v477
    %655 = vmatprep.subr.mxu0 %v474
    %656 = vmatpush2.msra.mxu0 %v473
    %657 = vmatprep.subr.mxu0 %v470
    %658 = vmatpush2.msra.mxu0 %v469
    %659 = vmatprep.subr.mxu0 %v466
    %660 = vmatpush2.msra.mxu0 %v465
    %661 = vmatprep.subr.mxu0 %v462
    %662 = vmatpush2.msra.mxu0 %v461
    %663 = vmatprep.subr.mxu0 %v458
    %664 = vmatpush2.msra.mxu0 %v457
    %665 = vmatprep.subr.mxu0 %v454
    %666 = vmatpush2.msra.mxu0 %v453
    %667 = vmatprep.subr.mxu0 %v450
    %668 = vmatpush2.msra.mxu0 %v449
    %669 = vmatprep.mubr.f32.mxu0 %v61
    %670 = vmatmul.mubr.f32.gmra.mxu0 %v381
    %v671 = vpop.f32.mrf.mxu0
    %v672 = vadd.f32 %v525, %v671
    %v673 = vpop.f32.mrf.mxu0
    %v674 = vadd.f32 %v529, %v673
    %675 = vdwg.mxu0
    %v676 = vxor.u32 %v601, 2147483648
    %v677 = vmul.f32 %v676, 1.442695
    %v678 = vpow.pop %v677
    %v679 = vadd.f32 %v678, 1.0
    %v680 = vrcp.pop %v679
    %v681 = vmul.f32 1.0, %v680
    %v682 = vxor.u32 %v603, 2147483648
    %v683 = vmul.f32 %v682, 1.442695
    %v684 = vpow.pop %v683
    %v685 = vadd.f32 %v684, 1.0
    %v686 = vrcp.pop %v685
    %v687 = vmul.f32 1.0, %v686
    %v688 = vtanh.pop %v672
    %v689 = vxor.u32 %v674, 2147483648
    %v690 = vmul.f32 %v689, 1.442695
    %v691 = vpow.pop %v690
    %v692 = vadd.f32 %v691, 1.0
    %v693 = vrcp.pop %v692
    %v694 = vmul.f32 1.0, %v693
    %v695 = vmul.f32 %v687, %v64
    %v696 = vmul.f32 %v681, %v688
    %v697 = vadd.f32 %v695, %v696
    %v698 = vtanh.pop %v697
    %v699 = vmul.f32 %v694, %v698
    %v700 = vld [vmem:[#allocation5] sm:$0xff]
    %v701 = vld [vmem:[#allocation5 + $0x8] sm:$0xff]
    %v702 = vld [vmem:[#allocation5 + $0x10] sm:$0xff]
    %v703 = vld [vmem:[#allocation5 + $0x18] sm:$0xff]
    %v704 = vld [vmem:[#allocation5 + $0x20] sm:$0xff]
    %v705 = vld [vmem:[#allocation5 + $0x28] sm:$0xff]
    %v706 = vld [vmem:[#allocation5 + $0x30] sm:$0xff]
    %v707 = vld [vmem:[#allocation5 + $0x38] sm:$0xff]
    %v708 = vld [vmem:[#allocation5 + $0x40] sm:$0xff]
    %v709 = vld [vmem:[#allocation5 + $0x48] sm:$0xff]
    %v710 = vld [vmem:[#allocation5 + $0x50] sm:$0xff]
    %v711 = vld [vmem:[#allocation5 + $0x58] sm:$0xff]
    %v712 = vld [vmem:[#allocation5 + $0x60] sm:$0xff]
    %v713 = vld [vmem:[#allocation5 + $0x68] sm:$0xff]
    %v714 = vld [vmem:[#allocation5 + $0x70] sm:$0xff]
    %v715 = vld [vmem:[#allocation5 + $0x78] sm:$0xff]
    %v716 = vld [vmem:[%s6] sm:$0x1]
    %717 = vmatprep.subr.mxu0 0.0
    %718 = vmatpush1.msra.mxu0 %v715
    %719 = vmatprep.subr.mxu0 0.0
    %720 = vmatpush1.msra.mxu0 %v714
    %721 = vmatprep.subr.mxu0 0.0
    %722 = vmatpush1.msra.mxu0 %v713
    %723 = vmatprep.subr.mxu0 0.0
    %724 = vmatpush1.msra.mxu0 %v712
    %725 = vmatprep.subr.mxu0 0.0
    %726 = vmatpush1.msra.mxu0 %v711
    %727 = vmatprep.subr.mxu0 0.0
    %728 = vmatpush1.msra.mxu0 %v710
    %729 = vmatprep.subr.mxu0 0.0
    %730 = vmatpush1.msra.mxu0 %v709
    %731 = vmatprep.subr.mxu0 0.0
    %732 = vmatpush1.msra.mxu0 %v708
    %733 = vmatprep.subr.mxu0 0.0
    %734 = vmatpush1.msra.mxu0 %v707
    %735 = vmatprep.subr.mxu0 0.0
    %736 = vmatpush1.msra.mxu0 %v706
    %737 = vmatprep.subr.mxu0 0.0
    %738 = vmatpush1.msra.mxu0 %v705
    %739 = vmatprep.subr.mxu0 0.0
    %740 = vmatpush1.msra.mxu0 %v704
    %741 = vmatprep.subr.mxu0 0.0
    %742 = vmatpush1.msra.mxu0 %v703
    %743 = vmatprep.subr.mxu0 0.0
    %744 = vmatpush1.msra.mxu0 %v702
    %745 = vmatprep.subr.mxu0 0.0
    %746 = vmatpush1.msra.mxu0 %v701
    %747 = vmatprep.subr.mxu0 0.0
    %748 = vmatpush1.msra.mxu0 %v700
    %749 = vmatprep.subr.mxu0 0.0
    %750 = vmatpush2.msra.mxu0 0.0
    %751 = vmatprep.subr.mxu0 0.0
    %752 = vmatpush2.msra.mxu0 0.0
    %753 = vmatprep.subr.mxu0 0.0
    %754 = vmatpush2.msra.mxu0 0.0
    %755 = vmatprep.subr.mxu0 0.0
    %756 = vmatpush2.msra.mxu0 0.0
    %757 = vmatprep.subr.mxu0 0.0
    %758 = vmatpush2.msra.mxu0 0.0
    %759 = vmatprep.subr.mxu0 0.0
    %760 = vmatpush2.msra.mxu0 0.0
    %761 = vmatprep.subr.mxu0 0.0
    %762 = vmatpush2.msra.mxu0 0.0
    %763 = vmatprep.subr.mxu0 0.0
    %764 = vmatpush2.msra.mxu0 0.0
    %765 = vmatprep.subr.mxu0 0.0
    %766 = vmatpush2.msra.mxu0 0.0
    %767 = vmatprep.subr.mxu0 0.0
    %768 = vmatpush2.msra.mxu0 0.0
    %769 = vmatprep.subr.mxu0 0.0
    %770 = vmatpush2.msra.mxu0 0.0
    %771 = vmatprep.subr.mxu0 0.0
    %772 = vmatpush2.msra.mxu0 0.0
    %773 = vmatprep.subr.mxu0 0.0
    %774 = vmatpush2.msra.mxu0 0.0
    %775 = vmatprep.subr.mxu0 0.0
    %776 = vmatpush2.msra.mxu0 0.0
    %777 = vmatprep.subr.mxu0 0.0
    %778 = vmatpush2.msra.mxu0 0.0
    %779 = vmatprep.subr.mxu0 0.0
    %780 = vmatpush2.msra.mxu0 0.0
    %781 = vmatprep.mubr.f32.mxu0 0.0
    %782 = vmatmul.mubr.f32.gmra.mxu0 %v699
    %v783 = vpop.f32.mrf.mxu0
    %v784 = vadd.f32 %v716, %v783
    %v785 = vpop.f32.mrf.mxu0
    %786 = vdwg.mxu0
    %vm787 = vcmask 1040384
    %v788 = vsel %vm787, %v784, -inf
    %789 = vmax.xlane.f32.xlu0 %v788
    %v790 = vpop.xlane.xlu0 %789
    %v791 = vsub.f32 %v784, %v790
    %v792 = vmul.f32 %v791, 1.442695
    %v793 = vpow.pop %v792
    %v794 = vsel %vm787, %v793, 0.0
    %795 = vadd.xlane.f32.xlu0 %v794
    %v796 = vpop.xlane.xlu0 %795
    %v797 = vrcp.pop %v796
    %v798 = vmul.f32 %v793, %v797
    %799 = vst [vmem:[%s7] sm:$0x1] %v798
    %800 = vst [vmem:[#allocation7] sm:$0x1] %v381
    %801 = vst [vmem:[#allocation8] sm:$0x1] %v379
    %s802 = scalar_lea.vmem [#allocation7], 1
    %803 = vst [vmem:[%s802] sm:$0x1] %v699
    %s804 = scalar_lea.vmem [#allocation8], 1
    %805 = vst [vmem:[%s804] sm:$0x1] %v697
    // Predicated region
    $region38: #{_lstm_forward_seq.1} parent=1 // pred_check
      _
    $region39: #{_lstm_forward_seq.1} parent=1 // pred_check_branch
      %807 = sbr.rel (0) target = $region41
    $region40: #{_lstm_forward_seq.1} parent=1 // pred_region
      _
    $region41: #{_lstm_forward_seq.1} parent=1 // pred_fallthru
      _
    // Predicated region
    $region42: #{_lstm_forward_seq.1} parent=1 // pred_check
      _
    $region43: #{_lstm_forward_seq.1} parent=1 // pred_check_branch
      %809 = sbr.rel (0) target = $region45
    $region44: #{_lstm_forward_seq.1} parent=1 // pred_region
      %s811 = ssub.s32 32, 32
      %812 = vsyncadd [#allocation4], %s811
      %s813 = sshll.u32 [#allocation7], 4
      %s814 = int_to_ptr.vmem [resolvable:$true] %s813
      %819 = dma.vmem_to_hbm [thread:$0]  %s814, 32, %s8, [#allocation4], 16, 16, 1
    $region45: #{_lstm_forward_seq.1} parent=1 // pred_fallthru
      _
    // Predicated region
    $region46: #{_lstm_forward_seq.1} parent=1 // pred_check
      _
    $region47: #{_lstm_forward_seq.1} parent=1 // pred_check_branch
      %821 = sbr.rel (0) target = $region49
    $region48: #{_lstm_forward_seq.1} parent=1 // pred_region
      %s823 = ssub.s32 32, 32
      %824 = vsyncadd [#allocation9], %s823
      %s825 = sshll.u32 [#allocation8], 4
      %s826 = int_to_ptr.vmem [resolvable:$true] %s825
      %831 = dma.vmem_to_hbm [thread:$0]  %s826, 32, %s9, [#allocation9], 16, 16, 1
    $region49: #{_lstm_forward_seq.1} parent=1 // pred_fallthru
      _
    // Predicated region
    $region50: #{_lstm_forward_seq.1} parent=1 // pred_check
      _
    $region51: #{_lstm_forward_seq.1} parent=1 // pred_check_branch
      %833 = sbr.rel (0) target = $region53
    $region52: #{_lstm_forward_seq.1} parent=1 // pred_region
      _
    $region53: #{_lstm_forward_seq.1} parent=1 // pred_fallthru
      _
    // Predicated region
    $region54: #{_lstm_forward_seq.1} parent=1 // pred_check
      _
    $region55: #{_lstm_forward_seq.1} parent=1 // pred_check_branch
      %835 = sbr.rel (0) target = $region57
    $region56: #{_lstm_forward_seq.1} parent=1 // pred_region
      %836 = dma.done [#allocation4], 32
    $region57: #{_lstm_forward_seq.1} parent=1 // pred_fallthru
      _
    // Predicated region
    $region58: #{_lstm_forward_seq.1} parent=1 // pred_check
      _
    $region59: #{_lstm_forward_seq.1} parent=1 // pred_check_branch
      %838 = sbr.rel (0) target = $region61
    $region60: #{_lstm_forward_seq.1} parent=1 // pred_region
      %839 = dma.done [#allocation9], 32
    $region61: #{_lstm_forward_seq.1} parent=1 // pred_fallthru
      _
    %840 = vsyncpa [#allocation3], 1
    %841 = vsyncpa [#allocation6], 1
    %842 = vsyncpa [#allocation4], 1
    %843 = vsyncpa [#allocation9], 1

</llo_original>
